<compile_context>
chip_gen: v7x
topology: tpu7x:2x2x1
jax: 0.10.0
libtpu: 0.0.40
codegen_flags: <defaults>
</compile_context>

<pallas_src>
import functools
import numpy as np

import jax
import jax.numpy as jnp
from jax.experimental import pallas as pl
from jax.experimental.pallas import tpu as pltpu


# ----------------------------------------------------------------------------- helpers


def _gaussian_weights(sigma: float, truncate: float = 4.0):
    """Same weights as scipy.ndimage._gaussian_kernel1d (order=0)."""
    radius = int(truncate * float(sigma) + 0.5)
    t = np.arange(-radius, radius + 1, dtype=np.float64)
    w = np.exp(-0.5 * (t / float(sigma)) ** 2)
    w = w / w.sum()
    # correlate1d uses weights[::-1]; symmetric kernel -> identical.
    return radius, tuple(float(v) for v in w)


def _reflect_index(i: int, n: int) -> int:
    """scipy mode='reflect' (numpy 'symmetric') index, with repeated reflection."""
    if n == 1:
        return 0
    period = 2 * n
    i = i % period
    if i < 0:
        i += period
    return i if i < n else period - 1 - i


def _round_up(a: int, m: int) -> int:
    return -(-a // m) * m


def _round_down(a: int, m: int) -> int:
    return (a // m) * m


def _pick_tiling(rows: int, w: int, itemsize: int):
    """Pick (block_cols, sub_cols).

    block_cols: lanes (original slab rows) per grid step  -> controls DMA tile size.
    sub_cols  : lanes per in-register accumulator chunk   -> controls vreg pressure.
    """
    # Keep the f32 accumulator (w x sub_cols) around <= 16 vregs (64 KiB).
    sub_cols = min(1024, max(128, _round_down((64 * 1024) // (4 * max(w, 1)), 128)))
    sub_cols = min(sub_cols, _round_up(rows, 128))

    rows_pad = _round_up(rows, sub_cols)

    # VMEM per lane-column of a grid step: double-buffered input + output tiles.
    bytes_per_col = 4 * w * itemsize
    vmem_budget = 20 * 1024 * 1024           # conservative: fits v7x (64 MiB physical)
    cap_vmem = max(sub_cols, _round_down(vmem_budget // max(bytes_per_col, 1), sub_cols))
    # ~2 MiB in + ~2 MiB out per grid step is plenty to amortize per-step overhead.
    cap_target = max(sub_cols, _round_down((4 * 1024 * 1024) // max(2 * w * itemsize, 1), sub_cols))
    cap_unroll = 16 * sub_cols               # bound the static unroll of the sub-chunk loop

    block_cols = min(cap_vmem, cap_target, cap_unroll, rows_pad)
    # Keep >= 2 grid steps when rows allow, so both v7x TensorCores get work.
    if block_cols >= rows_pad and rows_pad >= 2 * sub_cols:
        block_cols = max(sub_cols, _round_down(rows_pad // 2, sub_cols))
    return block_cols, sub_cols


# ----------------------------------------------------------------------------- kernel


def _gauss1d_kernel(x_ref, o_ref, pad_ref, *, weights, radius, left_src, right_src,
                    w, sub_cols, n_sub):
    """x_ref: (w, block_cols) input tile (rows on lanes, W on sublanes).
    o_ref: (w, block_cols) output tile.
    pad_ref: (w + 2*radius, sub_cols) f32 VMEM scratch holding the reflected halo.
    All shifts are along the sublane axis; all column offsets are multiples of 128.
    """
    n_taps = len(weights)
    for s in range(n_sub):                      # static unroll over lane sub-chunks
        sl = slice(s * sub_cols, (s + 1) * sub_cols)

        # Middle of the padded buffer.
        pad_ref[radius:radius + w, :] = x_ref[:, sl].astype(jnp.float32)
        # Reflected halo rows (static indices; handles radius > W via repeated reflection).
        for j, src in enumerate(left_src):
            pad_ref[j:j + 1, :] = x_ref[src:src + 1, sl].astype(jnp.float32)
        for j, src in enumerate(right_src):
            pad_ref[radius + w + j:radius + w + j + 1, :] = (
                x_ref[src:src + 1, sl].astype(jnp.float32))

        # Gaussian taps: sublane-offset slices of the padded scratch, f32 accumulation.
        acc = weights[0] * pad_ref[0:w, :]
        for k in range(1, n_taps):
            acc = acc + weights[k] * pad_ref[k:k + w, :]

        o_ref[:, sl] = acc.astype(o_ref.dtype)


# ----------------------------------------------------------------------------- wrapper


def gaussian_convolution(x, sigma: float, truncate: float = 4.0,
                         block_cols: int = None, sub_cols: int = None):
    """x: [B, C, H, W] (NCHW).  Returns Gaussian-smoothed x along the last axis."""
    radius, weights = _gaussian_weights(sigma, truncate)
    b, c, h, w = x.shape
    rows = b * c * h
    itemsize = x.dtype.itemsize

    # Static reflect-index tables for the left/right halo rows.
    left_src = tuple(_reflect_index(s, w) for s in range(-radius, 0))
    right_src = tuple(_reflect_index(s, w) for s in range(w, w + radius))

    auto_bc, auto_sc = _pick_tiling(rows, w, itemsize)
    if sub_cols is None:
        sub_cols = auto_sc
    if block_cols is None:
        block_cols = auto_bc
    block_cols = max(sub_cols, (block_cols // sub_cols) * sub_cols)
    n_sub = block_cols // sub_cols

    # Lane-dense layout: rows of the NCHW slab on the 128-lane axis, W on sublanes.
    xt = x.reshape(rows, w).T                                  # (w, rows)
    padded_cols = _round_up(rows, block_cols)
    if padded_cols != rows:
        xt = jnp.pad(xt, ((0, 0), (0, padded_cols - rows)))    # zero cols, sliced off later

    grid = (padded_cols // block_cols,)

    kernel = functools.partial(
        _gauss1d_kernel, weights=weights, radius=radius, left_src=left_src,
        right_src=right_src, w=w, sub_cols=sub_cols, n_sub=n_sub)

    out_t = pl.pallas_call(
        kernel,
        out_shape=jax.ShapeDtypeStruct((w, padded_cols), x.dtype),
        grid_spec=pltpu.PrefetchScalarGridSpec(
            num_scalar_prefetch=0,
            grid=grid,
            in_specs=[pl.BlockSpec((w, block_cols), lambda i: (0, i))],
            out_specs=pl.BlockSpec((w, block_cols), lambda i: (0, i)),
            scratch_shapes=[pltpu.VMEM((w + 2 * radius, sub_cols), jnp.float32)],
        ),
        compiler_params=pltpu.CompilerParams(
            dimension_semantics=("parallel",),
            vmem_limit_bytes=32 * 1024 * 1024,
        ),
        cost_estimate=pl.CostEstimate(
            flops=2 * len(weights) * w * padded_cols,
            transcendentals=0,
            bytes_accessed=2 * w * padded_cols * itemsize,
        ),
    )(xt)

    return out_t[:, :rows].T.reshape(b, c, h, w)


# ----------------------------------------------------------------------------- reference


def _reference(x, sigma: float, truncate: float = 4.0):
    """Pure-JAX reference (same math, same reflect indexing) for a sanity check."""
    radius, weights = _gaussian_weights(sigma, truncate)
    b, c, h, w = x.shape
    x2d = x.reshape(b * c * h, w)
    if radius:
        left = np.asarray([_reflect_index(s, w) for s in range(-radius, 0)], dtype=np.int32)
        right = np.asarray([_reflect_index(s, w) for s in range(w, w + radius)], dtype=np.int32)
        xpad = jnp.concatenate([x2d[:, left], x2d, x2d[:, right]], axis=1)
    else:
        xpad = x2d
    acc = jnp.zeros(x2d.shape, jnp.float32)
    for k, wk in enumerate(weights):
        acc = acc + wk * xpad[:, k:k + w].astype(jnp.float32)
    return acc.astype(x.dtype).reshape(b, c, h, w)


if __name__ == "__main__":
    sigma = 1.0
    n_channels = 4  # module attribute (unused by the forward, kept for parity)

    key = jax.random.PRNGKey(0)
    x = jax.random.normal(key, (2, n_channels, 16, 16), dtype=jnp.float32)

    out = jax.block_until_ready(gaussian_convolution(x, sigma=sigma))
    ref = jax.block_until_ready(_reference(x, sigma=sigma))
    np.testing.assert_allclose(np.asarray(out), np.asarray(ref), rtol=1e-5, atol=1e-5)

    print("KERNEL_OK")
</pallas_src>

<mosaic_0001>
module attributes {stable_mosaic.version = 11 : i64} {
  func.func @_gauss1d_kernel(%arg0: i32, %arg1: memref<16x128xf32, #tpu.memory_space<vmem>>, %arg2: memref<16x128xf32, #tpu.memory_space<vmem>>, %arg3: memref<24x128xf32, #tpu.memory_space<vmem>>) attributes {dimension_semantics = [#tpu.dimension_semantics<parallel>], iteration_bounds = array<i64: 1>, scalar_prefetch = 0 : i64, scratch_operands = 1 : i64, tpu.core_type = #tpu.core_type<tc>, window_params = [{transform_indices = @transform_0, window_bounds = array<i64: 16, 128>}, {transform_indices = @transform_1, window_bounds = array<i64: 16, 128>}]} {
    %c0 = arith.constant 0 : index
    %c0_0 = arith.constant 0 : index
    %0 = vector.load %arg1[%c0, %c0_0] : memref<16x128xf32, #tpu.memory_space<vmem>>, vector<16x128xf32>
    %c4 = arith.constant 4 : index
    %c0_1 = arith.constant 0 : index
    %1 = vector.load %arg3[%c4, %c0_1] : memref<24x128xf32, #tpu.memory_space<vmem>>, vector<16x128xf32>
    tpu.vector_store %arg3[%c4, %c0_1], %0 {strides = array<i32>} : memref<24x128xf32, #tpu.memory_space<vmem>>, vector<16x128xf32>,
    %c3 = arith.constant 3 : index
    %c0_2 = arith.constant 0 : index
    %2 = vector.load %arg1[%c3, %c0_2] : memref<16x128xf32, #tpu.memory_space<vmem>>, vector<1x128xf32>
    %c0_3 = arith.constant 0 : index
    %c0_4 = arith.constant 0 : index
    %3 = vector.load %arg3[%c0_3, %c0_4] : memref<24x128xf32, #tpu.memory_space<vmem>>, vector<1x128xf32>
    tpu.vector_store %arg3[%c0_3, %c0_4], %2 {strides = array<i32>} : memref<24x128xf32, #tpu.memory_space<vmem>>, vector<1x128xf32>,
    %c2 = arith.constant 2 : index
    %c0_5 = arith.constant 0 : index
    %4 = vector.load %arg1[%c2, %c0_5] : memref<16x128xf32, #tpu.memory_space<vmem>>, vector<1x128xf32>
    %c1 = arith.constant 1 : index
    %c0_6 = arith.constant 0 : index
    %5 = vector.load %arg3[%c1, %c0_6] : memref<24x128xf32, #tpu.memory_space<vmem>>, vector<1x128xf32>
    tpu.vector_store %arg3[%c1, %c0_6], %4 {strides = array<i32>} : memref<24x128xf32, #tpu.memory_space<vmem>>, vector<1x128xf32>,
    %c1_7 = arith.constant 1 : index
    %c0_8 = arith.constant 0 : index
    %6 = vector.load %arg1[%c1_7, %c0_8] : memref<16x128xf32, #tpu.memory_space<vmem>>, vector<1x128xf32>
    %c2_9 = arith.constant 2 : index
    %c0_10 = arith.constant 0 : index
    %7 = vector.load %arg3[%c2_9, %c0_10] : memref<24x128xf32, #tpu.memory_space<vmem>>, vector<1x128xf32>
    tpu.vector_store %arg3[%c2_9, %c0_10], %6 {strides = array<i32>} : memref<24x128xf32, #tpu.memory_space<vmem>>, vector<1x128xf32>,
    %c0_11 = arith.constant 0 : index
    %c0_12 = arith.constant 0 : index
    %8 = vector.load %arg1[%c0_11, %c0_12] : memref<16x128xf32, #tpu.memory_space<vmem>>, vector<1x128xf32>
    %c3_13 = arith.constant 3 : index
    %c0_14 = arith.constant 0 : index
    %9 = vector.load %arg3[%c3_13, %c0_14] : memref<24x128xf32, #tpu.memory_space<vmem>>, vector<1x128xf32>
    tpu.vector_store %arg3[%c3_13, %c0_14], %8 {strides = array<i32>} : memref<24x128xf32, #tpu.memory_space<vmem>>, vector<1x128xf32>,
    %c15 = arith.constant 15 : index
    %c0_15 = arith.constant 0 : index
    %10 = vector.load %arg1[%c15, %c0_15] : memref<16x128xf32, #tpu.memory_space<vmem>>, vector<1x128xf32>
    %c20 = arith.constant 20 : index
    %c0_16 = arith.constant 0 : index
    %11 = vector.load %arg3[%c20, %c0_16] : memref<24x128xf32, #tpu.memory_space<vmem>>, vector<1x128xf32>
    tpu.vector_store %arg3[%c20, %c0_16], %10 {strides = array<i32>} : memref<24x128xf32, #tpu.memory_space<vmem>>, vector<1x128xf32>,
    %c14 = arith.constant 14 : index
    %c0_17 = arith.constant 0 : index
    %12 = vector.load %arg1[%c14, %c0_17] : memref<16x128xf32, #tpu.memory_space<vmem>>, vector<1x128xf32>
    %c21 = arith.constant 21 : index
    %c0_18 = arith.constant 0 : index
    %13 = vector.load %arg3[%c21, %c0_18] : memref<24x128xf32, #tpu.memory_space<vmem>>, vector<1x128xf32>
    tpu.vector_store %arg3[%c21, %c0_18], %12 {strides = array<i32>} : memref<24x128xf32, #tpu.memory_space<vmem>>, vector<1x128xf32>,
    %c13 = arith.constant 13 : index
    %c0_19 = arith.constant 0 : index
    %14 = vector.load %arg1[%c13, %c0_19] : memref<16x128xf32, #tpu.memory_space<vmem>>, vector<1x128xf32>
    %c22 = arith.constant 22 : index
    %c0_20 = arith.constant 0 : index
    %15 = vector.load %arg3[%c22, %c0_20] : memref<24x128xf32, #tpu.memory_space<vmem>>, vector<1x128xf32>
    tpu.vector_store %arg3[%c22, %c0_20], %14 {strides = array<i32>} : memref<24x128xf32, #tpu.memory_space<vmem>>, vector<1x128xf32>,
    %c12 = arith.constant 12 : index
    %c0_21 = arith.constant 0 : index
    %16 = vector.load %arg1[%c12, %c0_21] : memref<16x128xf32, #tpu.memory_space<vmem>>, vector<1x128xf32>
    %c23 = arith.constant 23 : index
    %c0_22 = arith.constant 0 : index
    %17 = vector.load %arg3[%c23, %c0_22] : memref<24x128xf32, #tpu.memory_space<vmem>>, vector<1x128xf32>
    tpu.vector_store %arg3[%c23, %c0_22], %16 {strides = array<i32>} : memref<24x128xf32, #tpu.memory_space<vmem>>, vector<1x128xf32>,
    %c0_23 = arith.constant 0 : index
    %c0_24 = arith.constant 0 : index
    %18 = vector.load %arg3[%c0_23, %c0_24] : memref<24x128xf32, #tpu.memory_space<vmem>>, vector<16x128xf32>
    %cst = arith.constant 1.33830617E-4 : f32
    %19 = vector.broadcast %cst : f32 to vector<16x128xf32>
    %20 = arith.mulf %19, %18 : vector<16x128xf32>
    %c1_25 = arith.constant 1 : index
    %c0_26 = arith.constant 0 : index
    %21 = vector.load %arg3[%c1_25, %c0_26] : memref<24x128xf32, #tpu.memory_space<vmem>>, vector<16x128xf32>
    %cst_27 = arith.constant 0.00443186145 : f32
    %22 = vector.broadcast %cst_27 : f32 to vector<16x128xf32>
    %23 = arith.mulf %22, %21 : vector<16x128xf32>
    %24 = arith.addf %20, %23 : vector<16x128xf32>
    %c2_28 = arith.constant 2 : index
    %c0_29 = arith.constant 0 : index
    %25 = vector.load %arg3[%c2_28, %c0_29] : memref<24x128xf32, #tpu.memory_space<vmem>>, vector<16x128xf32>
    %cst_30 = arith.constant 0.0539911278 : f32
    %26 = vector.broadcast %cst_30 : f32 to vector<16x128xf32>
    %27 = arith.mulf %26, %25 : vector<16x128xf32>
    %28 = arith.addf %24, %27 : vector<16x128xf32>
    %c3_31 = arith.constant 3 : index
    %c0_32 = arith.constant 0 : index
    %29 = vector.load %arg3[%c3_31, %c0_32] : memref<24x128xf32, #tpu.memory_space<vmem>>, vector<16x128xf32>
    %cst_33 = arith.constant 0.241971448 : f32
    %30 = vector.broadcast %cst_33 : f32 to vector<16x128xf32>
    %31 = arith.mulf %30, %29 : vector<16x128xf32>
    %32 = arith.addf %28, %31 : vector<16x128xf32>
    %c4_34 = arith.constant 4 : index
    %c0_35 = arith.constant 0 : index
    %33 = vector.load %arg3[%c4_34, %c0_35] : memref<24x128xf32, #tpu.memory_space<vmem>>, vector<16x128xf32>
    %cst_36 = arith.constant 0.398943484 : f32
    %34 = vector.broadcast %cst_36 : f32 to vector<16x128xf32>
    %35 = arith.mulf %34, %33 : vector<16x128xf32>
    %36 = arith.addf %32, %35 : vector<16x128xf32>
    %c5 = arith.constant 5 : index
    %c0_37 = arith.constant 0 : index
    %37 = vector.load %arg3[%c5, %c0_37] : memref<24x128xf32, #tpu.memory_space<vmem>>, vector<16x128xf32>
    %cst_38 = arith.constant 0.241971448 : f32
    %38 = vector.broadcast %cst_38 : f32 to vector<16x128xf32>
    %39 = arith.mulf %38, %37 : vector<16x128xf32>
    %40 = arith.addf %36, %39 : vector<16x128xf32>
    %c6 = arith.constant 6 : index
    %c0_39 = arith.constant 0 : index
    %41 = vector.load %arg3[%c6, %c0_39] : memref<24x128xf32, #tpu.memory_space<vmem>>, vector<16x128xf32>
    %cst_40 = arith.constant 0.0539911278 : f32
    %42 = vector.broadcast %cst_40 : f32 to vector<16x128xf32>
    %43 = arith.mulf %42, %41 : vector<16x128xf32>
    %44 = arith.addf %40, %43 : vector<16x128xf32>
    %c7 = arith.constant 7 : index
    %c0_41 = arith.constant 0 : index
    %45 = vector.load %arg3[%c7, %c0_41] : memref<24x128xf32, #tpu.memory_space<vmem>>, vector<16x128xf32>
    %cst_42 = arith.constant 0.00443186145 : f32
    %46 = vector.broadcast %cst_42 : f32 to vector<16x128xf32>
    %47 = arith.mulf %46, %45 : vector<16x128xf32>
    %48 = arith.addf %44, %47 : vector<16x128xf32>
    %c8 = arith.constant 8 : index
    %c0_43 = arith.constant 0 : index
    %49 = vector.load %arg3[%c8, %c0_43] : memref<24x128xf32, #tpu.memory_space<vmem>>, vector<16x128xf32>
    %cst_44 = arith.constant 1.33830617E-4 : f32
    %50 = vector.broadcast %cst_44 : f32 to vector<16x128xf32>
    %51 = arith.mulf %50, %49 : vector<16x128xf32>
    %52 = arith.addf %48, %51 : vector<16x128xf32>
    %c0_45 = arith.constant 0 : index
    %c0_46 = arith.constant 0 : index
    %53 = vector.load %arg2[%c0_45, %c0_46] : memref<16x128xf32, #tpu.memory_space<vmem>>, vector<16x128xf32>
    tpu.vector_store %arg2[%c0_45, %c0_46], %52 {strides = array<i32>} : memref<16x128xf32, #tpu.memory_space<vmem>>, vector<16x128xf32>,
    return
  }
  func.func @transform_0(%arg0: i32) -> (i32, i32) {
    %c0_i32 = arith.constant 0 : i32
    %c0_i32_0 = arith.constant 0 : i32
    return %c0_i32, %arg0 : i32, i32
  }
  func.func @transform_1(%arg0: i32) -> (i32, i32) {
    %c0_i32 = arith.constant 0 : i32
    %c0_i32_0 = arith.constant 0 : i32
    return %c0_i32, %arg0 : i32, i32
  }
}

</mosaic_0001>

<llo_original>
// kernel: tpu_custom_call.1
$region0: #{tpu_custom_call.1}
  #allocation0 [shape = 'u32[]', space=smem, size = 0x4, offset = 0x4, fixed_abs, tag = 'smem constant byte address 0x4 - core index']
  #allocation1 [shape = 'u32[144,128]{1,0:T(1,128)}', space=vmem, size = 0x12000, scoped, tag = 'internal scratch']
  #allocation2 [shape = 'f32[24,128]{1,0:T(8,128)}', space=vmem, size = 0x3000, scoped, tag = 'scratch operand']
  %s0 = inlined_call_operand.hbm [shape: f32[16,128], index: 0, kind: input, shape index: {}]
  %s1 = inlined_call_operand.hbm [shape: f32[16,128], index: 1, kind: output, shape index: {}]
  %s2 = sld [smem:[#allocation0]]
  $region18: #{tpu_custom_call.1} parent=0
    _
  %s4 = ssub.s32 1, %s2
  %s5 = scalar_select 0, %s4, %s2
  $region1: #{tpu_custom_call.1} parent=0
    #allocation3 [shape = 'u8[8192]{0}', space=vmem, size = 0x2000, scoped, tag = 'input window, operand 0, single buffered']
    #allocation4 [shape = 's32[1]{0}', space=sflag, size = 0x4, scoped, tag = 'scoped memory for tpu_custom_call.1']
    #allocation5 [shape = 's32[1]{0}', space=sflag, size = 0x4, scoped, tag = 'scoped memory for tpu_custom_call.1']
    #allocation6 [shape = 'u8[8192]{0}', space=vmem, size = 0x2000, scoped, tag = 'output window, operand 0, single buffered']
    %6 = vsyncpa [#allocation4], 0
    %7 = vsyncpa [#allocation5], 0
    // Predicated region
    $region2: #{tpu_custom_call.1} parent=1 // pred_check
      _
    $region3: #{tpu_custom_call.1} parent=1 // pred_check_branch
      %9 = sbr.rel (0) target = $region5
    $region4: #{tpu_custom_call.1} parent=1 // pred_region
      %s11 = ssub.s32 256, 256
      %12 = vsyncadd [#allocation4], %s11
      %s13 = sshll.u32 [#allocation3], 4
      %s14 = int_to_ptr.vmem [resolvable:$true] %s13
      %19 = dma.hbm_to_vmem [thread:$0]  %s0, 256, %s14, [#allocation4], 128, 128, 8
    $region5: #{tpu_custom_call.1} parent=1 // pred_fallthru
      _
    // Predicated region
    $region6: #{tpu_custom_call.1} parent=1 // pred_check
      _
    $region7: #{tpu_custom_call.1} parent=1 // pred_check_branch
      %21 = sbr.rel (0) target = $region9
    $region8: #{tpu_custom_call.1} parent=1 // pred_region
      %22 = dma.done [#allocation4], 256
    $region9: #{tpu_custom_call.1} parent=1 // pred_fallthru
      _
    %v23 = vld [vmem:[#allocation3] sm:$0xff]
    %v24 = vld [vmem:[#allocation3 + $0x8] sm:$0xff]
    %25 = vst [vmem:[#allocation2 + $0x4] sm:$0xff] %v23
    %26 = vst [vmem:[#allocation2 + $0xc] sm:$0xff] %v24
    %v27 = vld [vmem:[#allocation3 + $0x3] sm:$0x1]
    %28 = vst [vmem:[#allocation2] sm:$0x1] %v27
    %v29 = vld [vmem:[#allocation3 + $0x2] sm:$0x1]
    %30 = vst [vmem:[#allocation2 + $0x1] sm:$0x1] %v29
    %v31 = vld [vmem:[#allocation3 + $0x1] sm:$0x1]
    %32 = vst [vmem:[#allocation2 + $0x2] sm:$0x1] %v31
    %v33 = vld [vmem:[#allocation3] sm:$0x1]
    %34 = vst [vmem:[#allocation2 + $0x3] sm:$0x1] %v33
    %v35 = vld [vmem:[#allocation3 + $0xf] sm:$0x1]
    %36 = vst [vmem:[#allocation2 + $0x14] sm:$0x1] %v35
    %v37 = vld [vmem:[#allocation3 + $0xe] sm:$0x1]
    %38 = vst [vmem:[#allocation2 + $0x15] sm:$0x1] %v37
    %v39 = vld [vmem:[#allocation3 + $0xd] sm:$0x1]
    %40 = vst [vmem:[#allocation2 + $0x16] sm:$0x1] %v39
    %v41 = vld [vmem:[#allocation3 + $0xc] sm:$0x1]
    %42 = vst [vmem:[#allocation2 + $0x17] sm:$0x1] %v41
    %v43 = vld [vmem:[#allocation2] sm:$0xff]
    %v44 = vld [vmem:[#allocation2 + $0x8] sm:$0xff]
    %v45 = vmul.f32 %v43, 0.00013383062
    %v46 = vmul.f32 %v44, 0.00013383062
    %v47 = vld [vmem:[#allocation2 + $0x1] sm:$0xff]
    %v48 = vld [vmem:[#allocation2 + $0x9] sm:$0xff]
    %v49 = vmul.f32 %v47, 0.0044318615
    %v50 = vmul.f32 %v48, 0.0044318615
    %v51 = vadd.f32 %v45, %v49
    %v52 = vadd.f32 %v46, %v50
    %v53 = vld [vmem:[#allocation2 + $0x2] sm:$0xff]
    %v54 = vld [vmem:[#allocation2 + $0xa] sm:$0xff]
    %v55 = vmul.f32 %v53, 0.053991128
    %v56 = vmul.f32 %v54, 0.053991128
    %v57 = vadd.f32 %v51, %v55
    %v58 = vadd.f32 %v52, %v56
    %v59 = vld [vmem:[#allocation2 + $0x3] sm:$0xff]
    %v60 = vld [vmem:[#allocation2 + $0xb] sm:$0xff]
    %v61 = vmul.f32 %v59, 0.24197145
    %v62 = vmul.f32 %v60, 0.24197145
    %v63 = vadd.f32 %v57, %v61
    %v64 = vadd.f32 %v58, %v62
    %v65 = vld [vmem:[#allocation2 + $0x4] sm:$0xff]
    %v66 = vld [vmem:[#allocation2 + $0xc] sm:$0xff]
    %v67 = vmul.f32 %v65, 0.39894348
    %v68 = vmul.f32 %v66, 0.39894348
    %v69 = vadd.f32 %v63, %v67
    %v70 = vadd.f32 %v64, %v68
    %v71 = vld [vmem:[#allocation2 + $0x5] sm:$0xff]
    %v72 = vld [vmem:[#allocation2 + $0xd] sm:$0xff]
    %v73 = vmul.f32 %v71, 0.24197145
    %v74 = vmul.f32 %v72, 0.24197145
    %v75 = vadd.f32 %v69, %v73
    %v76 = vadd.f32 %v70, %v74
    %v77 = vld [vmem:[#allocation2 + $0x6] sm:$0xff]
    %v78 = vld [vmem:[#allocation2 + $0xe] sm:$0xff]
    %v79 = vmul.f32 %v77, 0.053991128
    %v80 = vmul.f32 %v78, 0.053991128
    %v81 = vadd.f32 %v75, %v79
    %v82 = vadd.f32 %v76, %v80
    %v83 = vld [vmem:[#allocation2 + $0x7] sm:$0xff]
    %v84 = vld [vmem:[#allocation2 + $0xf] sm:$0xff]
    %v85 = vmul.f32 %v83, 0.0044318615
    %v86 = vmul.f32 %v84, 0.0044318615
    %v87 = vadd.f32 %v81, %v85
    %v88 = vadd.f32 %v82, %v86
    %v89 = vld [vmem:[#allocation2 + $0x8] sm:$0xff]
    %v90 = vld [vmem:[#allocation2 + $0x10] sm:$0xff]
    %v91 = vmul.f32 %v89, 0.00013383062
    %v92 = vmul.f32 %v90, 0.00013383062
    %v93 = vadd.f32 %v87, %v91
    %v94 = vadd.f32 %v88, %v92
    %95 = vst [vmem:[#allocation6] sm:$0xff] %v93
    %96 = vst [vmem:[#allocation6 + $0x8] sm:$0xff] %v94
    // Predicated region
    $region10: #{tpu_custom_call.1} parent=1 // pred_check
      _
    $region11: #{tpu_custom_call.1} parent=1 // pred_check_branch
      %98 = sbr.rel (0) target = $region13
    $region12: #{tpu_custom_call.1} parent=1 // pred_region
      %s100 = ssub.s32 256, 256
      %101 = vsyncadd [#allocation5], %s100
      %s102 = sshll.u32 [#allocation6], 4
      %s103 = int_to_ptr.vmem [resolvable:$true] %s102
      %108 = dma.vmem_to_hbm [thread:$0]  %s103, 256, %s1, [#allocation5], 128, 128, 8
    $region13: #{tpu_custom_call.1} parent=1 // pred_fallthru
      _
    // Predicated region
    $region14: #{tpu_custom_call.1} parent=1 // pred_check
      _
    $region15: #{tpu_custom_call.1} parent=1 // pred_check_branch
      %110 = sbr.rel (0) target = $region17
    $region16: #{tpu_custom_call.1} parent=1 // pred_region
      %111 = dma.done [#allocation5], 256
    $region17: #{tpu_custom_call.1} parent=1 // pred_fallthru
      _
    %112 = vsyncpa [#allocation4], 1
    %113 = vsyncpa [#allocation5], 1

</llo_original>
